<compile_context>
chip_gen: v7x
topology: tpu7x:2x2x1
jax: 0.10.0
libtpu: 0.0.40
codegen_flags: <defaults>
</compile_context>

<pallas_src>
import functools

import jax
import jax.numpy as jnp
from jax.experimental import pallas as pl
from jax.experimental.pallas import tpu as pltpu


def _round_up(n, m):
    return ((n + m - 1) // m) * m


def _spn_kernel(x_ref, wcat_ref, bcat_ref, w2h_ref, o_ref, *, h_pad):
    x = x_ref[...]                                                  # (TB, F)
    # One fused matmul for everything that multiplies x:
    #   tmp[:, :h_pad]  = x @ W1t  + b1   (pre-activation of hidden layer)
    #   tmp[:, h_pad:]  = x @ W2x  + b2   (x-contribution to the output)
    tmp = (jnp.dot(x, wcat_ref[...], preferred_element_type=jnp.float32)
           + bcat_ref[...])                                         # (TB, h_pad + o_pad)
    h1 = jnp.maximum(tmp[:, :h_pad], 0.0)                           # (TB, h_pad), lane-aligned slice
    y = tmp[:, h_pad:] + jnp.dot(h1, w2h_ref[...],
                                 preferred_element_type=jnp.float32)  # (TB, o_pad)
    o_ref[...] = y.astype(o_ref.dtype)


def prepare_spn_params(w1, b1, w2, b2):
    """One-time layout prep (hoisted out of the forward path).

    w1: (H, F) torch layout.  w2: (O, F+H) torch layout.
    Returns padded, pre-transposed tensors laid out (in, out):
      wcat : (F, H_pad + O_pad)  = [ W1.T | W2[:, :F].T ]  (zero-padded columns)
      bcat : (1, H_pad + O_pad)  = [ b1   | b2          ]  (zero-padded)
      w2h  : (H_pad, O_pad)      =   W2[:, F:].T           (zero-padded)
    """
    H, F = w1.shape
    O = w2.shape[0]
    h_pad = _round_up(H, 128)
    o_pad = _round_up(O, 128)

    wcat = jnp.zeros((F, h_pad + o_pad), jnp.float32)
    wcat = wcat.at[:, :H].set(w1.T)                      # x -> h1 pre-act
    wcat = wcat.at[:, h_pad:h_pad + O].set(w2[:, :F].T)  # x -> y contribution

    bcat = jnp.zeros((1, h_pad + o_pad), jnp.float32)
    bcat = bcat.at[0, :H].set(b1)
    bcat = bcat.at[0, h_pad:h_pad + O].set(b2)

    w2h = jnp.zeros((h_pad, o_pad), jnp.float32)
    w2h = w2h.at[:H, :O].set(w2[:, F:].T)

    return {"wcat": wcat, "bcat": bcat, "w2h": w2h,
            "h_pad": h_pad, "o_pad": o_pad, "output_nodes": O}


def _pick_batch_tile(B):
    for tb in (512, 256, 128, 64, 32, 16, 8):
        if B % tb == 0:
            return tb
    return B  # tiny / irregular batch: single full block


def spn_forward_minimal(x, params):
    """x: (B, F) float32. params from prepare_spn_params(). Returns (B, O)."""
    B, F = x.shape
    wcat, bcat, w2h = params["wcat"], params["bcat"], params["w2h"]
    h_pad, o_pad, O = params["h_pad"], params["o_pad"], params["output_nodes"]
    n_cat = h_pad + o_pad

    tb = _pick_batch_tile(B)
    grid = (B // tb,)

    out_padded = pl.pallas_call(
        functools.partial(_spn_kernel, h_pad=h_pad),
        out_shape=jax.ShapeDtypeStruct((B, o_pad), x.dtype),
        grid=grid,
        in_specs=[
            pl.BlockSpec((tb, F), lambda i: (i, 0)),          # x: tiled over batch
            pl.BlockSpec((F, n_cat), lambda i: (0, 0)),       # fused weight, resident
            pl.BlockSpec((1, n_cat), lambda i: (0, 0)),       # fused bias, resident
            pl.BlockSpec((h_pad, o_pad), lambda i: (0, 0)),   # W2h, resident
        ],
        out_specs=pl.BlockSpec((tb, o_pad), lambda i: (i, 0)),
        compiler_params=pltpu.CompilerParams(
            dimension_semantics=("parallel",)),
    )(x, wcat, bcat, w2h)

    return out_padded[:, :O]


def init_spn_params(key, input_features, total_nodes, output_nodes):
    """Deterministic init mimicking nn.Linear's U(-1/sqrt(in), 1/sqrt(in))."""
    hidden = total_nodes - output_nodes
    k1, k2, k3, k4 = jax.random.split(key, 4)
    in0 = input_features
    bound0 = 1.0 / jnp.sqrt(in0)
    w1 = jax.random.uniform(k1, (hidden, in0), jnp.float32, -bound0, bound0)
    b1 = jax.random.uniform(k2, (hidden,), jnp.float32, -bound0, bound0)
    in1 = input_features + hidden
    bound1 = 1.0 / jnp.sqrt(in1)
    w2 = jax.random.uniform(k3, (output_nodes, in1), jnp.float32, -bound1, bound1)
    b2 = jax.random.uniform(k4, (output_nodes,), jnp.float32, -bound1, bound1)
    return w1, b1, w2, b2


def spn_reference(x, w1, b1, w2, b2):
    """Pure-JAX reference reproducing the PyTorch minimal forward exactly."""
    h1 = jax.nn.relu(x @ w1.T + b1)
    cat = jnp.concatenate([x, h1], axis=-1)
    return cat @ w2.T + b2


if __name__ == "__main__":
    input_features = 32
    total_nodes = 48
    output_nodes = 16   # hidden_nodes = 32

    key = jax.random.PRNGKey(0)
    kx, kx2, kp = jax.random.split(key, 3)
    w1, b1, w2, b2 = init_spn_params(kp, input_features, total_nodes, output_nodes)

    # One-time layout prep (hoisted out of the forward path).
    params = prepare_spn_params(w1, b1, w2, b2)

    # Small batch (single grid step).
    x_small = jax.random.normal(kx, (8, input_features), jnp.float32)
    out_small = jax.block_until_ready(spn_forward_minimal(x_small, params))
    ref_small = spn_reference(x_small, w1, b1, w2, b2)
    assert out_small.shape == (8, output_nodes)
    assert jnp.allclose(out_small, ref_small, atol=1e-5, rtol=1e-5), "small-batch mismatch"

    # Larger batch exercising the parallel batch grid / pipelining path.
    x_big = jax.random.normal(kx2, (256, input_features), jnp.float32)
    out_big = jax.block_until_ready(spn_forward_minimal(x_big, params))
    ref_big = spn_reference(x_big, w1, b1, w2, b2)
    assert out_big.shape == (256, output_nodes)
    assert jnp.allclose(out_big, ref_big, atol=1e-5, rtol=1e-5), "big-batch mismatch"

    # TODO(synk): non-minimal path (per-node 1-wide Linear + GELU growth loop)
    # is a serial dependent chain of width-1 matmuls; not implemented here.
    print("KERNEL_OK")
</pallas_src>

<mosaic_0001>
module attributes {stable_mosaic.version = 11 : i64} {
  func.func @_spn_kernel(%arg0: i32, %arg1: memref<8x32xf32, #tpu.memory_space<vmem>>, %arg2: memref<32x256xf32, #tpu.memory_space<vmem>>, %arg3: memref<1x256xf32, #tpu.memory_space<vmem>>, %arg4: memref<128x128xf32, #tpu.memory_space<vmem>>, %arg5: memref<8x128xf32, #tpu.memory_space<vmem>>) attributes {dimension_semantics = [#tpu.dimension_semantics<parallel>], iteration_bounds = array<i64: 1>, scalar_prefetch = 0 : i64, scratch_operands = 0 : i64, tpu.core_type = #tpu.core_type<tc>, window_params = [{transform_indices = @transform_0, window_bounds = array<i64: 8, 32>}, {pipeline_mode = #tpu.pipeline_mode<synchronous>, transform_indices = @transform_1, window_bounds = array<i64: 32, 256>}, {pipeline_mode = #tpu.pipeline_mode<synchronous>, transform_indices = @transform_2, window_bounds = array<i64: 1, 256>}, {pipeline_mode = #tpu.pipeline_mode<synchronous>, transform_indices = @transform_3, window_bounds = array<i64: 128, 128>}, {transform_indices = @transform_4, window_bounds = array<i64: 8, 128>}]} {
    %c0 = arith.constant 0 : index
    %c0_0 = arith.constant 0 : index
    %0 = vector.load %arg1[%c0, %c0_0] : memref<8x32xf32, #tpu.memory_space<vmem>>, vector<8x32xf32>
    %c0_1 = arith.constant 0 : index
    %c0_2 = arith.constant 0 : index
    %1 = vector.load %arg2[%c0_1, %c0_2] : memref<32x256xf32, #tpu.memory_space<vmem>>, vector<32x256xf32>
    %cst = arith.constant dense<0.000000e+00> : vector<8x256xf32>
    %2 = tpu.matmul %0, %1, %cst {dimension_numbers = #tpu.dot_dimension_numbers<[1], [0], [0], [1], [0, 0, 1, 1], [], []>} : vector<8x32xf32>, vector<32x256xf32>, vector<8x256xf32> -> vector<8x256xf32>
    %c0_3 = arith.constant 0 : index
    %c0_4 = arith.constant 0 : index
    %3 = vector.load %arg3[%c0_3, %c0_4] : memref<1x256xf32, #tpu.memory_space<vmem>>, vector<1x256xf32>
    %4 = vector.broadcast %3 : vector<1x256xf32> to vector<8x256xf32>
    %5 = arith.addf %2, %4 : vector<8x256xf32>
    %6 = vector.extract_strided_slice %5 {offsets = [0, 0], sizes = [8, 128], strides = [1, 1]} : vector<8x256xf32> to vector<8x128xf32>
    %cst_5 = arith.constant 0.000000e+00 : f32
    %7 = vector.broadcast %cst_5 : f32 to vector<8x128xf32>
    %8 = arith.maximumf %6, %7 : vector<8x128xf32>
    %9 = vector.extract_strided_slice %5 {offsets = [0, 128], sizes = [8, 128], strides = [1, 1]} : vector<8x256xf32> to vector<8x128xf32>
    %c0_6 = arith.constant 0 : index
    %c0_7 = arith.constant 0 : index
    %10 = vector.load %arg4[%c0_6, %c0_7] : memref<128x128xf32, #tpu.memory_space<vmem>>, vector<128x128xf32>
    %cst_8 = arith.constant dense<0.000000e+00> : vector<8x128xf32>
    %11 = tpu.matmul %8, %10, %cst_8 {dimension_numbers = #tpu.dot_dimension_numbers<[1], [0], [0], [1], [0, 0, 1, 1], [], []>} : vector<8x128xf32>, vector<128x128xf32>, vector<8x128xf32> -> vector<8x128xf32>
    %12 = arith.addf %9, %11 : vector<8x128xf32>
    %c0_9 = arith.constant 0 : index
    %c0_10 = arith.constant 0 : index
    %13 = vector.load %arg5[%c0_9, %c0_10] : memref<8x128xf32, #tpu.memory_space<vmem>>, vector<8x128xf32>
    tpu.vector_store %arg5[%c0_9, %c0_10], %12 {strides = array<i32>} : memref<8x128xf32, #tpu.memory_space<vmem>>, vector<8x128xf32>,
    return
  }
  func.func @transform_0(%arg0: i32) -> (i32, i32) {
    %c0_i32 = arith.constant 0 : i32
    %c0_i32_0 = arith.constant 0 : i32
    return %arg0, %c0_i32 : i32, i32
  }
  func.func @transform_1(%arg0: i32) -> (i32, i32) {
    %c0_i32 = arith.constant 0 : i32
    %c0_i32_0 = arith.constant 0 : i32
    %c0_i32_1 = arith.constant 0 : i32
    return %c0_i32, %c0_i32_0 : i32, i32
  }
  func.func @transform_2(%arg0: i32) -> (i32, i32) {
    %c0_i32 = arith.constant 0 : i32
    %c0_i32_0 = arith.constant 0 : i32
    %c0_i32_1 = arith.constant 0 : i32
    return %c0_i32, %c0_i32_0 : i32, i32
  }
  func.func @transform_3(%arg0: i32) -> (i32, i32) {
    %c0_i32 = arith.constant 0 : i32
    %c0_i32_0 = arith.constant 0 : i32
    %c0_i32_1 = arith.constant 0 : i32
    return %c0_i32, %c0_i32_0 : i32, i32
  }
  func.func @transform_4(%arg0: i32) -> (i32, i32) {
    %c0_i32 = arith.constant 0 : i32
    %c0_i32_0 = arith.constant 0 : i32
    return %arg0, %c0_i32 : i32, i32
  }
}

</mosaic_0001>

<llo_original>
// kernel: tpu_custom_call.1
$region0: #{tpu_custom_call.1}
  #allocation0 [shape = 'u32[]', space=smem, size = 0x4, offset = 0x4, fixed_abs, tag = 'smem constant byte address 0x4 - core index']
  #allocation1 [shape = 'u32[144,128]{1,0:T(1,128)}', space=vmem, size = 0x12000, scoped, tag = 'internal scratch']
  %s0 = inlined_call_operand.hbm [shape: f32[8,32], index: 0, kind: input, shape index: {}]
  %s1 = inlined_call_operand.hbm [shape: f32[32,256], index: 1, kind: input, shape index: {}]
  %s2 = inlined_call_operand.vmem [shape: f32[1,256], index: 2, kind: input, shape index: {}]
  %s3 = inlined_call_operand.hbm [shape: f32[128,128], index: 3, kind: input, shape index: {}]
  %s4 = inlined_call_operand.hbm [shape: f32[8,128], index: 4, kind: output, shape index: {}]
  %s5 = sld [smem:[#allocation0]]
  $region38: #{tpu_custom_call.1} parent=0
    _
  %s7 = ssub.s32 1, %s5
  %s8 = scalar_select 0, %s7, %s5
  $region1: #{tpu_custom_call.1} parent=0
    #allocation2 [shape = 'u8[4096]{0}', space=vmem, size = 0x1000, scoped, tag = 'input window, operand 0, single buffered']
    #allocation3 [shape = 's32[1]{0}', space=sflag, size = 0x4, scoped, tag = 'scoped memory for tpu_custom_call.1']
    #allocation4 [shape = 's32[1]{0}', space=sflag, size = 0x4, scoped, tag = 'scoped memory for tpu_custom_call.1']
    #allocation5 [shape = 'u8[32768]{0}', space=vmem, size = 0x8000, scoped, tag = 'input window, operand 1, single buffered']
    #allocation6 [shape = 's32[1]{0}', space=sflag, size = 0x4, scoped, tag = 'scoped memory for tpu_custom_call.1']
    #allocation7 [shape = 'u8[65536]{0}', space=vmem, size = 0x10000, scoped, tag = 'input window, operand 3, single buffered']
    #allocation8 [shape = 'u8[4096]{0}', space=vmem, size = 0x1000, scoped, tag = 'output window, operand 0, single buffered']
    %9 = vsyncpa [#allocation3], 0
    %10 = vsyncpa [#allocation6], 0
    %11 = vsyncpa [#allocation4], 0
    // Predicated region
    $region2: #{tpu_custom_call.1} parent=1 // pred_check
      _
    $region3: #{tpu_custom_call.1} parent=1 // pred_check_branch
      %13 = sbr.rel (0) target = $region5
    $region4: #{tpu_custom_call.1} parent=1 // pred_region
      %s15 = ssub.s32 128, 128
      %16 = vsyncadd [#allocation3], %s15
      %s18 = sshll.u32 [#allocation2], 4
      %s19 = int_to_ptr.vmem [resolvable:$true] %s18
      %21 = dma.hbm_to_vmem [thread:$0]  %s0, 128, %s19, [#allocation3]
    $region5: #{tpu_custom_call.1} parent=1 // pred_fallthru
      _
    // Predicated region
    $region6: #{tpu_custom_call.1} parent=1 // pred_check
      _
    $region7: #{tpu_custom_call.1} parent=1 // pred_check_branch
      %23 = sbr.rel (0) target = $region9
    $region8: #{tpu_custom_call.1} parent=1 // pred_region
      %s25 = ssub.s32 1024, 1024
      %26 = vsyncadd [#allocation6], %s25
      %s27 = sshll.u32 [#allocation5], 4
      %s28 = int_to_ptr.vmem [resolvable:$true] %s27
      %33 = dma.hbm_to_vmem [thread:$0]  %s1, 1024, %s28, [#allocation6], 256, 256, 16
    $region9: #{tpu_custom_call.1} parent=1 // pred_fallthru
      _
    // Predicated region
    $region10: #{tpu_custom_call.1} parent=1 // pred_check
      _
    $region11: #{tpu_custom_call.1} parent=1 // pred_check_branch
      %35 = sbr.rel (0) target = $region13
    $region12: #{tpu_custom_call.1} parent=1 // pred_region
      _
    $region13: #{tpu_custom_call.1} parent=1 // pred_fallthru
      _
    // Predicated region
    $region14: #{tpu_custom_call.1} parent=1 // pred_check
      _
    $region15: #{tpu_custom_call.1} parent=1 // pred_check_branch
      %37 = sbr.rel (0) target = $region17
    $region16: #{tpu_custom_call.1} parent=1 // pred_region
      %s39 = ssub.s32 2048, 2048
      %40 = vsyncadd [#allocation6], %s39
      %s41 = sshll.u32 [#allocation7], 4
      %s42 = int_to_ptr.vmem [resolvable:$true] %s41
      %47 = dma.hbm_to_vmem [thread:$0]  %s3, 2048, %s42, [#allocation6], 128, 128, 8
    $region17: #{tpu_custom_call.1} parent=1 // pred_fallthru
      _
    // Predicated region
    $region18: #{tpu_custom_call.1} parent=1 // pred_check
      _
    $region19: #{tpu_custom_call.1} parent=1 // pred_check_branch
      %49 = sbr.rel (0) target = $region21
    $region20: #{tpu_custom_call.1} parent=1 // pred_region
      %50 = dma.done [#allocation3], 128
    $region21: #{tpu_custom_call.1} parent=1 // pred_fallthru
      _
    // Predicated region
    $region22: #{tpu_custom_call.1} parent=1 // pred_check
      _
    $region23: #{tpu_custom_call.1} parent=1 // pred_check_branch
      %52 = sbr.rel (0) target = $region25
    $region24: #{tpu_custom_call.1} parent=1 // pred_region
      %53 = dma.done [#allocation6], 1024
    $region25: #{tpu_custom_call.1} parent=1 // pred_fallthru
      _
    // Predicated region
    $region26: #{tpu_custom_call.1} parent=1 // pred_check
      _
    $region27: #{tpu_custom_call.1} parent=1 // pred_check_branch
      %55 = sbr.rel (0) target = $region29
    $region28: #{tpu_custom_call.1} parent=1 // pred_region
      %56 = dma.done [#allocation6], 2048
    $region29: #{tpu_custom_call.1} parent=1 // pred_fallthru
      _
    %v57 = vld [vmem:[#allocation2] sm:$0xff]
    %v58 = vld [vmem:[#allocation5] sm:$0xff]
    %v59 = vld [vmem:[#allocation5 + $0x8] sm:$0xff]
    %v60 = vld [vmem:[#allocation5 + $0x10] sm:$0xff]
    %v61 = vld [vmem:[#allocation5 + $0x18] sm:$0xff]
    %v62 = vld [vmem:[#allocation5 + $0x20] sm:$0xff]
    %v63 = vld [vmem:[#allocation5 + $0x28] sm:$0xff]
    %v64 = vld [vmem:[#allocation5 + $0x30] sm:$0xff]
    %v65 = vld [vmem:[#allocation5 + $0x38] sm:$0xff]
    %v66 = vld [vmem:[%s2] sm:$0x3]
    %v68 = vlaneseq
    %v69 = vshrl.u32 %v68, 7
    %v70 = vsub.s32 0, %v69
    %v71 = vrot.slane %v66, %v70
    %v72 = vlaneseq
    %v73 = vshrl.u32 %v72, 7
    %v74 = vsub.s32 1, %v73
    %v75 = vrot.slane %v66, %v74
    %vm78 = vcmask 261120
    %v80 = vsel %vm78, %v57, 0
    %82 = vmatprep.subr.mxu0 %v59
    %83 = vmatpush1.msra.mxu0 %v58
    %84 = vmatprep.subr.mxu0 %v61
    %85 = vmatpush1.msra.mxu0 %v60
    %86 = vmatprep.subr.mxu0 %v63
    %87 = vmatpush1.msra.mxu0 %v62
    %88 = vmatprep.subr.mxu0 %v65
    %89 = vmatpush1.msra.mxu0 %v64
    %90 = vmatprep.subr.mxu0 0.0
    %91 = vmatpush1.msra.mxu0 0.0
    %92 = vmatprep.subr.mxu0 0.0
    %93 = vmatpush1.msra.mxu0 0.0
    %94 = vmatprep.subr.mxu0 0.0
    %95 = vmatpush1.msra.mxu0 0.0
    %96 = vmatprep.subr.mxu0 0.0
    %97 = vmatpush1.msra.mxu0 0.0
    %98 = vmatprep.subr.mxu0 0.0
    %99 = vmatpush1.msra.mxu0 0.0
    %100 = vmatprep.subr.mxu0 0.0
    %101 = vmatpush1.msra.mxu0 0.0
    %102 = vmatprep.subr.mxu0 0.0
    %103 = vmatpush1.msra.mxu0 0.0
    %104 = vmatprep.subr.mxu0 0.0
    %105 = vmatpush1.msra.mxu0 0.0
    %106 = vmatprep.subr.mxu0 0.0
    %107 = vmatpush1.msra.mxu0 0.0
    %108 = vmatprep.subr.mxu0 0.0
    %109 = vmatpush1.msra.mxu0 0.0
    %110 = vmatprep.subr.mxu0 0.0
    %111 = vmatpush1.msra.mxu0 0.0
    %112 = vmatprep.subr.mxu0 0.0
    %113 = vmatpush1.msra.mxu0 0.0
    %114 = vmatprep.subr.mxu0 0.0
    %115 = vmatpush1.msra.mxu0 0.0
    %116 = vmatprep.subr.mxu0 0.0
    %117 = vmatpush1.msra.mxu0 0.0
    %118 = vmatprep.subr.mxu0 0.0
    %119 = vmatpush1.msra.mxu0 0.0
    %120 = vmatprep.subr.mxu0 0.0
    %121 = vmatpush1.msra.mxu0 0.0
    %122 = vmatprep.subr.mxu0 0.0
    %123 = vmatpush1.msra.mxu0 0.0
    %124 = vmatprep.subr.mxu0 0.0
    %125 = vmatpush1.msra.mxu0 0.0
    %126 = vmatprep.subr.mxu0 0.0
    %127 = vmatpush1.msra.mxu0 0.0
    %128 = vmatprep.subr.mxu0 0.0
    %129 = vmatpush1.msra.mxu0 0.0
    %130 = vmatprep.subr.mxu0 0.0
    %131 = vmatpush1.msra.mxu0 0.0
    %132 = vmatprep.subr.mxu0 0.0
    %133 = vmatpush1.msra.mxu0 0.0
    %134 = vmatprep.subr.mxu0 0.0
    %135 = vmatpush1.msra.mxu0 0.0
    %136 = vmatprep.subr.mxu0 0.0
    %137 = vmatpush1.msra.mxu0 0.0
    %138 = vmatprep.subr.mxu0 0.0
    %139 = vmatpush1.msra.mxu0 0.0
    %140 = vmatprep.subr.mxu0 0.0
    %141 = vmatpush1.msra.mxu0 0.0
    %142 = vmatprep.subr.mxu0 0.0
    %143 = vmatpush1.msra.mxu0 0.0
    %144 = vmatprep.subr.mxu0 0.0
    %145 = vmatpush1.msra.mxu0 0.0
    %146 = vmatprep.mubr.f32.mxu0 0.0
    %147 = vmatmul.mubr.f32.gmra.mrb[0].mxu0 %v80
    %v148 = vpop.f32.mrb[0].mxu0
    %v149 = vadd.f32 %v71, %v148
    %v150 = vpop.f32.mrb[0].mxu0
    %v151 = vadd.f32 %v75, %v150
    %152 = vdwg.mxu0
    %v153 = vmax.f32 %v149, 0.0
    %v154 = vld [vmem:[#allocation7] sm:$0xff]
    %v155 = vld [vmem:[#allocation7 + $0x8] sm:$0xff]
    %v156 = vld [vmem:[#allocation7 + $0x10] sm:$0xff]
    %v157 = vld [vmem:[#allocation7 + $0x18] sm:$0xff]
    %v158 = vld [vmem:[#allocation7 + $0x20] sm:$0xff]
    %v159 = vld [vmem:[#allocation7 + $0x28] sm:$0xff]
    %v160 = vld [vmem:[#allocation7 + $0x30] sm:$0xff]
    %v161 = vld [vmem:[#allocation7 + $0x38] sm:$0xff]
    %v162 = vld [vmem:[#allocation7 + $0x40] sm:$0xff]
    %v163 = vld [vmem:[#allocation7 + $0x48] sm:$0xff]
    %v164 = vld [vmem:[#allocation7 + $0x50] sm:$0xff]
    %v165 = vld [vmem:[#allocation7 + $0x58] sm:$0xff]
    %v166 = vld [vmem:[#allocation7 + $0x60] sm:$0xff]
    %v167 = vld [vmem:[#allocation7 + $0x68] sm:$0xff]
    %v168 = vld [vmem:[#allocation7 + $0x70] sm:$0xff]
    %v169 = vld [vmem:[#allocation7 + $0x78] sm:$0xff]
    %170 = vmatprep.subr.mxu0 0.0
    %171 = vmatpush1.msra.mxu0 %v154
    %172 = vmatprep.subr.mxu0 0.0
    %173 = vmatpush1.msra.mxu0 %v155
    %174 = vmatprep.subr.mxu0 0.0
    %175 = vmatpush1.msra.mxu0 %v156
    %176 = vmatprep.subr.mxu0 0.0
    %177 = vmatpush1.msra.mxu0 %v157
    %178 = vmatprep.subr.mxu0 0.0
    %179 = vmatpush1.msra.mxu0 %v158
    %180 = vmatprep.subr.mxu0 0.0
    %181 = vmatpush1.msra.mxu0 %v159
    %182 = vmatprep.subr.mxu0 0.0
    %183 = vmatpush1.msra.mxu0 %v160
    %184 = vmatprep.subr.mxu0 0.0
    %185 = vmatpush1.msra.mxu0 %v161
    %186 = vmatprep.subr.mxu0 0.0
    %187 = vmatpush1.msra.mxu0 %v162
    %188 = vmatprep.subr.mxu0 0.0
    %189 = vmatpush1.msra.mxu0 %v163
    %190 = vmatprep.subr.mxu0 0.0
    %191 = vmatpush1.msra.mxu0 %v164
    %192 = vmatprep.subr.mxu0 0.0
    %193 = vmatpush1.msra.mxu0 %v165
    %194 = vmatprep.subr.mxu0 0.0
    %195 = vmatpush1.msra.mxu0 %v166
    %196 = vmatprep.subr.mxu0 0.0
    %197 = vmatpush1.msra.mxu0 %v167
    %198 = vmatprep.subr.mxu0 0.0
    %199 = vmatpush1.msra.mxu0 %v168
    %200 = vmatprep.subr.mxu0 0.0
    %201 = vmatpush1.msra.mxu0 %v169
    %202 = vmatprep.subr.mxu0 0.0
    %203 = vmatpush1.msra.mxu0 0.0
    %204 = vmatprep.subr.mxu0 0.0
    %205 = vmatpush1.msra.mxu0 0.0
    %206 = vmatprep.subr.mxu0 0.0
    %207 = vmatpush1.msra.mxu0 0.0
    %208 = vmatprep.subr.mxu0 0.0
    %209 = vmatpush1.msra.mxu0 0.0
    %210 = vmatprep.subr.mxu0 0.0
    %211 = vmatpush1.msra.mxu0 0.0
    %212 = vmatprep.subr.mxu0 0.0
    %213 = vmatpush1.msra.mxu0 0.0
    %214 = vmatprep.subr.mxu0 0.0
    %215 = vmatpush1.msra.mxu0 0.0
    %216 = vmatprep.subr.mxu0 0.0
    %217 = vmatpush1.msra.mxu0 0.0
    %218 = vmatprep.subr.mxu0 0.0
    %219 = vmatpush1.msra.mxu0 0.0
    %220 = vmatprep.subr.mxu0 0.0
    %221 = vmatpush1.msra.mxu0 0.0
    %222 = vmatprep.subr.mxu0 0.0
    %223 = vmatpush1.msra.mxu0 0.0
    %224 = vmatprep.subr.mxu0 0.0
    %225 = vmatpush1.msra.mxu0 0.0
    %226 = vmatprep.subr.mxu0 0.0
    %227 = vmatpush1.msra.mxu0 0.0
    %228 = vmatprep.subr.mxu0 0.0
    %229 = vmatpush1.msra.mxu0 0.0
    %230 = vmatprep.subr.mxu0 0.0
    %231 = vmatpush1.msra.mxu0 0.0
    %232 = vmatprep.subr.mxu0 0.0
    %233 = vmatpush1.msra.mxu0 0.0
    %234 = vmatprep.mubr.f32.mxu0 0.0
    %235 = vmatmul.mubr.f32.gmra.mrb[0].mxu0 %v153
    %v236 = vpop.f32.mrb[0].mxu0
    %v237 = vadd.f32 0.0, %v236
    %v238 = vpop.f32.mrb[0].mxu0
    %239 = vdwg.mxu0
    %v240 = vadd.f32 %v151, %v237
    %241 = vst [vmem:[#allocation8] sm:$0xff] %v240
    // Predicated region
    $region30: #{tpu_custom_call.1} parent=1 // pred_check
      _
    $region31: #{tpu_custom_call.1} parent=1 // pred_check_branch
      %243 = sbr.rel (0) target = $region33
    $region32: #{tpu_custom_call.1} parent=1 // pred_region
      %s245 = ssub.s32 128, 128
      %246 = vsyncadd [#allocation4], %s245
      %s248 = sshll.u32 [#allocation8], 4
      %s249 = int_to_ptr.vmem [resolvable:$true] %s248
      %251 = dma.vmem_to_hbm [thread:$0]  %s249, 128, %s4, [#allocation4]
    $region33: #{tpu_custom_call.1} parent=1 // pred_fallthru
      _
    // Predicated region
    $region34: #{tpu_custom_call.1} parent=1 // pred_check
      _
    $region35: #{tpu_custom_call.1} parent=1 // pred_check_branch
      %253 = sbr.rel (0) target = $region37
    $region36: #{tpu_custom_call.1} parent=1 // pred_region
      %254 = dma.done [#allocation4], 128
    $region37: #{tpu_custom_call.1} parent=1 // pred_fallthru
      _
    %255 = vsyncpa [#allocation3], 1
    %256 = vsyncpa [#allocation6], 1
    %257 = vsyncpa [#allocation4], 1

</llo_original>
